<compile_context>
chip_gen: v7x
topology: tpu7x:2x2x1
jax: 0.10.0
libtpu: 0.0.40
codegen_flags: <defaults>
</compile_context>

<pallas_src>
import functools

import jax
import jax.numpy as jnp
from jax.experimental import pallas as pl
from jax.experimental.pallas import tpu as pltpu


_FUSED_VMEM_BYTES = 2 * 1024 * 1024      # fused-path ceiling (safe on v5e/v6e/v7x)
_TILE_ELEMS = 512 * 1024                 # ~2 MiB of f32 per streaming block


# ----------------------------------------------------------------------------
# Kernels
# ----------------------------------------------------------------------------
def _radial_fused_kernel(d_minus_1, ab_ref, zref_ref, zin_ref, zk_ref, ldj_ref):
    """Whole tensor resident in VMEM: norm reduction + elementwise in one pass.

    ab_ref   : SMEM (2,) f32  -> [a, b]  (b = softplus(b_raw) - a, from wrapper)
    zref_ref : VMEM (1, D_eff) f32
    zin_ref  : VMEM (B_eff, D_eff) f32
    """
    a = ab_ref[0]
    b = ab_ref[1]

    z = zin_ref[...]
    dif = z - zref_ref[...]

    # Global L2 norm.  Pad rows (if any) equal z_ref exactly, so dif == 0
    # there and they do not perturb the norm.  Keep everything as (1, 1)
    # vectors so logs/sqrt stay on the vector units.
    sq = jnp.sum(jnp.sum(dif * dif, axis=1, keepdims=True), axis=0, keepdims=True)
    norm = jnp.sqrt(sq)                          # (1, 1)
    denom = a + norm                             # (1, 1)
    c = b / denom                                # (1, 1)
    scale = 1.0 + a * b / (denom * denom)        # (1, 1)

    frac = dif * c
    zk_ref[...] = z + frac

    if d_minus_1 == 0.0:                         # D == 1: frac^0 == 1
        ldj_ref[...] = jnp.zeros_like(z) + jnp.log(jnp.abs(scale))
    else:
        ldj_const = d_minus_1 * jnp.log(jnp.abs(c)) + jnp.log(jnp.abs(scale))
        ldj_ref[...] = d_minus_1 * jnp.log(jnp.abs(dif)) + ldj_const


def _radial_stream_kernel(d_minus_1, scalars_ref, zref_ref, zin_ref, zk_ref, ldj_ref):
    """Streaming tile kernel; all scalar math hoisted to the wrapper.

    scalars_ref : SMEM (2,) f32 -> [c = b/(a+norm), ldj_const]
    zref_ref    : VMEM (1, td) f32
    zin_ref     : VMEM (tb, td) f32
    """
    c = scalars_ref[0]
    ldj_const = scalars_ref[1]

    z = zin_ref[...]
    dif = z - zref_ref[...]
    zk_ref[...] = z + c * dif
    if d_minus_1 == 0.0:                         # D == 1
        ldj_ref[...] = jnp.zeros_like(z) + ldj_const
    else:
        ldj_ref[...] = d_minus_1 * jnp.log(jnp.abs(dif)) + ldj_const


# ----------------------------------------------------------------------------
# Wrapper
# ----------------------------------------------------------------------------
def _pack_lanes(z, z_ref, B, D):
    """Fold batch rows into lanes so the last dim becomes 128 (lane-dense)."""
    if D >= 128 or 128 % D != 0:
        return z, z_ref, B, False
    k = 128 // D
    B_pad = ((B + k - 1) // k) * k
    if B_pad != B:
        pad = jnp.broadcast_to(z_ref, (B_pad - B, D))   # dif == 0 on pad rows
        z = jnp.concatenate([z, pad], axis=0)
    z2 = z.reshape(B_pad // k, k * D)
    zref2 = jnp.tile(z_ref, (1, k))                     # matches reshape ordering
    return z2, zref2, B_pad, True


def _choose_tiles(B_eff, D_eff):
    """~2 MiB f32 blocks; rows multiple of 8, lanes full or multiple of 128."""
    td = D_eff
    if D_eff % 128 == 0 and 8 * D_eff > _TILE_ELEMS:
        cand = max(128, (_TILE_ELEMS // 8) // 128 * 128)
        td = 128
        for m in range(cand // 128, 0, -1):
            t = m * 128
            if D_eff % t == 0:
                td = t
                break
    rows = max(8, (_TILE_ELEMS // td) // 8 * 8)
    tb = B_eff if B_eff <= rows else rows
    # Guarantee >= 2 grid tiles when the row axis can be split (v7x megacore).
    if tb == B_eff and td == D_eff and B_eff >= 16 and B_eff % 8 == 0:
        tb = ((B_eff // 2 + 7) // 8) * 8
    return tb, td


def radial_transform(z, z_ref_param, a_param, b_param, *, force_streaming=False):
    """z: (B, D); z_ref_param: (1, D); a_param, b_param: (1,). Returns (zk, ldj)."""
    B, D = z.shape
    z = z.astype(jnp.float32)
    z_ref_param = z_ref_param.astype(jnp.float32).reshape(1, D)
    a = a_param.astype(jnp.float32).reshape(())
    b_raw = b_param.astype(jnp.float32).reshape(())
    b = jax.nn.softplus(b_raw) - a                      # scalar, no HBM traffic on z

    # Lane-dense packing (pads B with z_ref rows -> dif == 0 on the pad).
    z2, zref2, B_pad, packed = _pack_lanes(z, z_ref_param, B, D)
    B_eff, D_eff = z2.shape

    use_fused = (not force_streaming) and (B_eff * D_eff * 4 <= _FUSED_VMEM_BYTES)

    if use_fused:
        # Single pass: norm reduction + elementwise, one HBM read of z.
        ab = jnp.stack([a, b])
        kernel = functools.partial(_radial_fused_kernel, float(D - 1))
        zk2, ldj2 = pl.pallas_call(
            kernel,
            out_shape=(
                jax.ShapeDtypeStruct((B_eff, D_eff), jnp.float32),
                jax.ShapeDtypeStruct((B_eff, D_eff), jnp.float32),
            ),
            in_specs=[
                pl.BlockSpec(memory_space=pltpu.MemorySpace.SMEM),   # [a, b]
                pl.BlockSpec(memory_space=pltpu.MemorySpace.VMEM),   # z_ref
                pl.BlockSpec(memory_space=pltpu.MemorySpace.VMEM),   # z
            ],
            out_specs=(
                pl.BlockSpec(memory_space=pltpu.MemorySpace.VMEM),
                pl.BlockSpec(memory_space=pltpu.MemorySpace.VMEM),
            ),
        )(ab, zref2, z2)
    else:
        # Streaming path: wrapper does the global reduce + all scalar math.
        dif = z - z_ref_param
        norm = jnp.sqrt(jnp.sum(dif * dif))             # torch.norm (no dim)
        denom = a + norm
        c = b / denom                                   # frac = c * dif
        scale = 1.0 + a * b / (denom * denom)
        if D > 1:
            ldj_const = (D - 1) * jnp.log(jnp.abs(c)) + jnp.log(jnp.abs(scale))
        else:
            ldj_const = jnp.log(jnp.abs(scale))
        scalars = jnp.stack([c, ldj_const])             # (2,) f32 -> SMEM

        tb, td = _choose_tiles(B_eff, D_eff)
        grid = (pl.cdiv(B_eff, tb), pl.cdiv(D_eff, td))
        kernel = functools.partial(_radial_stream_kernel, float(D - 1))
        zk2, ldj2 = pl.pallas_call(
            kernel,
            out_shape=(
                jax.ShapeDtypeStruct((B_eff, D_eff), jnp.float32),
                jax.ShapeDtypeStruct((B_eff, D_eff), jnp.float32),
            ),
            grid=grid,
            in_specs=[
                pl.BlockSpec(memory_space=pltpu.MemorySpace.SMEM),   # scalars
                pl.BlockSpec((1, td), lambda i, j: (0, j)),          # z_ref tile
                pl.BlockSpec((tb, td), lambda i, j: (i, j)),         # z tile
            ],
            out_specs=(
                pl.BlockSpec((tb, td), lambda i, j: (i, j)),         # zk
                pl.BlockSpec((tb, td), lambda i, j: (i, j)),         # ldj
            ),
            compiler_params=pltpu.CompilerParams(
                dimension_semantics=("parallel", "parallel"),
            ),
        )(scalars, zref2, z2)

    if packed:
        zk2 = zk2.reshape(B_pad, D)[:B]
        ldj2 = ldj2.reshape(B_pad, D)[:B]
    return zk2, ldj2


# ----------------------------------------------------------------------------
# Reference + checks
# ----------------------------------------------------------------------------
def _reference(z, z_ref_param, a_param, b_param):
    """Pure-JAX mirror of the PyTorch forward (plus the equivalent stable ldj)."""
    B, D = z.shape
    a = a_param.reshape(())
    b_raw = b_param.reshape(())
    dif = z - z_ref_param
    norm = jnp.sqrt(jnp.sum(dif * dif))
    b = jnp.log(1.0 + jnp.exp(b_raw)) - a
    denom = a + norm
    frac = b * dif / denom
    zk = z + frac
    scale = 1.0 + a * b / denom**2
    ldj_pow = jnp.log(jnp.abs(frac ** (D - 1) * scale))                  # literal form
    ldj_log = (D - 1) * jnp.log(jnp.abs(frac)) + jnp.log(jnp.abs(scale)) # stable form
    return zk, ldj_pow, ldj_log


def _check(B, D, key, force_streaming=False):
    init_scale = 0.01
    k_a, k_b, k_zref, k_z = jax.random.split(key, 4)

    # Parameter init mirroring the module's __init__.
    a_param = (jax.random.uniform(k_a, (1,), jnp.float32) + 1e-6) * init_scale
    b_param = jax.random.normal(k_b, (1,), jnp.float32) * init_scale
    z_ref_param = jax.random.normal(k_zref, (1, D), jnp.float32) * init_scale
    z = jax.random.normal(k_z, (B, D), jnp.float32)

    zk, ldj = radial_transform(z, z_ref_param, a_param, b_param,
                               force_streaming=force_streaming)
    jax.block_until_ready((zk, ldj))

    zk_ref, ldj_pow, ldj_log = _reference(z, z_ref_param, a_param, b_param)
    assert zk.shape == (B, D) and ldj.shape == (B, D)
    assert jnp.allclose(zk, zk_ref, atol=1e-5, rtol=1e-5), (B, D, force_streaming)
    # Kernel produces the mathematically equivalent log-domain form.
    assert jnp.allclose(ldj, ldj_log, atol=1e-3, rtol=1e-3), (B, D, force_streaming)
    # Where the literal pow form does not underflow / lose precision in f32,
    # the kernel matches it as well.
    ok = jnp.isfinite(ldj_pow) & (ldj_pow > -60.0)
    assert jnp.allclose(jnp.where(ok, ldj, 0.0), jnp.where(ok, ldj_pow, 0.0),
                        atol=1e-3, rtol=1e-3), (B, D, force_streaming)


if __name__ == "__main__":
    key = jax.random.PRNGKey(0)
    ks = jax.random.split(key, 6)
    _check(2, 32, ks[0])                          # fused, packed + padded -> (1, 128)
    _check(8, 32, ks[1])                          # fused, packed exact   -> (2, 128)
    _check(6, 32, ks[2])                          # fused, packed + padded -> (2, 128)
    _check(16, 1, ks[3])                          # D == 1 degenerate case
    _check(64, 32, ks[4], force_streaming=True)   # streaming kernel, 2 row tiles
    _check(4096, 256, ks[5])                      # natural streaming, grid (2, 1)
    print("KERNEL_OK")
</pallas_src>

<mosaic_0001>
module attributes {stable_mosaic.version = 11 : i64} {
  func.func @_radial_fused_kernel(%arg0: memref<2xf32, #tpu.memory_space<smem>>, %arg1: memref<1x128xf32, #tpu.memory_space<vmem>>, %arg2: memref<1x128xf32, #tpu.memory_space<vmem>>, %arg3: memref<1x128xf32, #tpu.memory_space<vmem>>, %arg4: memref<1x128xf32, #tpu.memory_space<vmem>>) attributes {dimension_semantics = [], scalar_prefetch = 0 : i64, scratch_operands = 0 : i64, tpu.core_type = #tpu.core_type<tc>} {
    %c0 = arith.constant 0 : index
    %0 = memref.load %arg0[%c0] : memref<2xf32, #tpu.memory_space<smem>>
    %c1 = arith.constant 1 : index
    %1 = memref.load %arg0[%c1] : memref<2xf32, #tpu.memory_space<smem>>
    %c0_0 = arith.constant 0 : index
    %c0_1 = arith.constant 0 : index
    %2 = vector.load %arg2[%c0_0, %c0_1] : memref<1x128xf32, #tpu.memory_space<vmem>>, vector<1x128xf32>
    %c0_2 = arith.constant 0 : index
    %c0_3 = arith.constant 0 : index
    %3 = vector.load %arg1[%c0_2, %c0_3] : memref<1x128xf32, #tpu.memory_space<vmem>>, vector<1x128xf32>
    %4 = arith.subf %2, %3 : vector<1x128xf32>
    %5 = arith.mulf %4, %4 : vector<1x128xf32>
    %cst = arith.constant dense<0.000000e+00> : vector<1xf32>
    %6 = vector.multi_reduction <add>, %5, %cst [1] : vector<1x128xf32> to vector<1xf32>
    %7 = vector.shape_cast %6 : vector<1xf32> to vector<1x1xf32>
    %cst_4 = arith.constant dense<0.000000e+00> : vector<1xf32>
    %8 = vector.multi_reduction <add>, %7, %cst_4 [0] : vector<1x1xf32> to vector<1xf32>
    %9 = vector.shape_cast %8 : vector<1xf32> to vector<1x1xf32>
    %10 = math.sqrt %9 : vector<1x1xf32>
    %11 = vector.broadcast %0 : f32 to vector<1x1xf32>
    %12 = arith.addf %11, %10 : vector<1x1xf32>
    %13 = vector.broadcast %1 : f32 to vector<1x1xf32>
    %14 = arith.divf %13, %12 : vector<1x1xf32>
    %15 = arith.mulf %0, %1 : f32
    %16 = arith.mulf %12, %12 : vector<1x1xf32>
    %17 = vector.broadcast %15 : f32 to vector<1x1xf32>
    %18 = arith.divf %17, %16 : vector<1x1xf32>
    %cst_5 = arith.constant 1.000000e+00 : f32
    %19 = vector.broadcast %cst_5 : f32 to vector<1x1xf32>
    %20 = arith.addf %19, %18 : vector<1x1xf32>
    %21 = vector.broadcast %14 : vector<1x1xf32> to vector<1x128xf32>
    %22 = arith.mulf %4, %21 : vector<1x128xf32>
    %23 = arith.addf %2, %22 : vector<1x128xf32>
    %c0_6 = arith.constant 0 : index
    %c0_7 = arith.constant 0 : index
    %24 = vector.load %arg3[%c0_6, %c0_7] : memref<1x128xf32, #tpu.memory_space<vmem>>, vector<1x128xf32>
    tpu.vector_store %arg3[%c0_6, %c0_7], %23 {strides = array<i32>} : memref<1x128xf32, #tpu.memory_space<vmem>>, vector<1x128xf32>,
    %25 = math.absf %14 : vector<1x1xf32>
    %26 = math.log %25 : vector<1x1xf32>
    %cst_8 = arith.constant 3.100000e+01 : f32
    %27 = vector.broadcast %cst_8 : f32 to vector<1x1xf32>
    %28 = arith.mulf %27, %26 : vector<1x1xf32>
    %29 = math.absf %20 : vector<1x1xf32>
    %30 = math.log %29 : vector<1x1xf32>
    %31 = arith.addf %28, %30 : vector<1x1xf32>
    %32 = math.absf %4 : vector<1x128xf32>
    %33 = math.log %32 : vector<1x128xf32>
    %cst_9 = arith.constant 3.100000e+01 : f32
    %34 = vector.broadcast %cst_9 : f32 to vector<1x128xf32>
    %35 = arith.mulf %34, %33 : vector<1x128xf32>
    %36 = vector.broadcast %31 : vector<1x1xf32> to vector<1x128xf32>
    %37 = arith.addf %35, %36 : vector<1x128xf32>
    %c0_10 = arith.constant 0 : index
    %c0_11 = arith.constant 0 : index
    %38 = vector.load %arg4[%c0_10, %c0_11] : memref<1x128xf32, #tpu.memory_space<vmem>>, vector<1x128xf32>
    tpu.vector_store %arg4[%c0_10, %c0_11], %37 {strides = array<i32>} : memref<1x128xf32, #tpu.memory_space<vmem>>, vector<1x128xf32>,
    return
  }
}

</mosaic_0001>

<llo_original>
// kernel: tpu_custom_call.1
$region0: #{tpu_custom_call.1}
  #allocation0 [shape = 'u32[]', space=smem, size = 0x4, offset = 0x4, fixed_abs, tag = 'smem constant byte address 0x4 - core index']
  #allocation1 [shape = 'u32[144,128]{1,0:T(1,128)}', space=vmem, size = 0x12000, scoped, tag = 'internal scratch']
  %s0 = inlined_call_operand.hbm [shape: f32[2], index: 0, kind: input, shape index: {}]
  %s1 = inlined_call_operand.vmem [shape: f32[1,128], index: 1, kind: input, shape index: {}]
  %s2 = inlined_call_operand.vmem [shape: f32[1,128], index: 2, kind: input, shape index: {}]
  %s3 = inlined_call_operand.hbm [shape: f32[1,128], index: 3, kind: output, shape index: {0}]
  %s4 = inlined_call_operand.hbm [shape: f32[1,128], index: 4, kind: output, shape index: {1}]
  %5 = xla_tuple %s3, %s4
  %s6 = sld [smem:[#allocation0]]
  $region34: #{tpu_custom_call.1} parent=0
    _
  %s8 = ssub.s32 1, %s6
  %s9 = scalar_select 0, %s8, %s6
  $region1: #{tpu_custom_call.1} parent=0
    #allocation2 [shape = 'u8[512]{0}', space=smem, size = 0x200, scoped, tag = 'input window, operand 0, single buffered']
    #allocation3 [shape = 's32[1]{0}', space=sflag, size = 0x4, scoped, tag = 'scoped memory for tpu_custom_call.1']
    #allocation4 [shape = 's32[1]{0}', space=sflag, size = 0x4, scoped, tag = 'scoped memory for tpu_custom_call.1']
    #allocation5 [shape = 'u8[512]{0}', space=vmem, size = 0x400, scoped, tag = 'output window, operand 0, single buffered']
    #allocation6 [shape = 'u8[512]{0}', space=vmem, size = 0x400, scoped, tag = 'output window, operand 1, single buffered']
    #allocation7 [shape = 's32[1]{0}', space=sflag, size = 0x4, scoped, tag = 'scoped memory for tpu_custom_call.1']
    %10 = vsyncpa [#allocation4], 0
    %11 = vsyncpa [#allocation3], 0
    %12 = vsyncpa [#allocation7], 0
    // Predicated region
    $region2: #{tpu_custom_call.1} parent=1 // pred_check
      _
    $region3: #{tpu_custom_call.1} parent=1 // pred_check_branch
      %14 = sbr.rel (0) target = $region5
    $region4: #{tpu_custom_call.1} parent=1 // pred_region
      %s16 = ssub.s32 16, 16
      %17 = vsyncadd [#allocation4], %s16
      %20 = dma.hbm_to_smem %s0, 16, [#allocation2], [#allocation4]
    $region5: #{tpu_custom_call.1} parent=1 // pred_fallthru
      _
    // Predicated region
    $region6: #{tpu_custom_call.1} parent=1 // pred_check
      _
    $region7: #{tpu_custom_call.1} parent=1 // pred_check_branch
      %22 = sbr.rel (0) target = $region9
    $region8: #{tpu_custom_call.1} parent=1 // pred_region
      _
    $region9: #{tpu_custom_call.1} parent=1 // pred_fallthru
      _
    // Predicated region
    $region10: #{tpu_custom_call.1} parent=1 // pred_check
      _
    $region11: #{tpu_custom_call.1} parent=1 // pred_check_branch
      %24 = sbr.rel (0) target = $region13
    $region12: #{tpu_custom_call.1} parent=1 // pred_region
      _
    $region13: #{tpu_custom_call.1} parent=1 // pred_fallthru
      _
    // Predicated region
    $region14: #{tpu_custom_call.1} parent=1 // pred_check
      _
    $region15: #{tpu_custom_call.1} parent=1 // pred_check_branch
      %26 = sbr.rel (0) target = $region17
    $region16: #{tpu_custom_call.1} parent=1 // pred_region
      %27 = dma.done [#allocation4], 16
    $region17: #{tpu_custom_call.1} parent=1 // pred_fallthru
      _
    %28 = sfence
    %s29 = sld [smem:[#allocation2]]
    %s30 = sld [smem:[#allocation2 + $0x1]]
    %v31 = vld [vmem:[%s2] sm:$0x1]
    %v32 = vld [vmem:[%s1] sm:$0x1]
    %v33 = vsub.f32 %v31, %v32
    %v34 = vmul.f32 %v33, %v33
    %vm35 = vcmask 1040384
    %v36 = vsel %vm35, %v34, 0.0
    %37 = vadd.xlane.f32.xlu0 %v36
    %v38 = vpop.xlane.xlu0 %37
    %v39 = vadd.f32 %v38, 0.0
    %v40 = vrsqrt.pop %v39
    %v41 = vmul.f32 %v39, %v40
    %vm42 = vcmp.eq.f32.partialorder %v39, inf
    %v43 = vsel %vm42, %v39, %v41
    %vm44 = vcmp.eq.f32.partialorder %v39, 0.0
    %v45 = vand.u32 %v39, 2147483648
    %v46 = vsel %vm44, %v45, %v43
    %v47 = vstv %s29
    %v48 = vadd.f32 %v47, %v46
    %v49 = vstv %s30
    %v50 = vrcp.pop %v48
    %v51 = vmul.f32 %v49, %v50
    %s52 = smul.f32 %s29, %s30
    %v53 = vmul.f32 %v48, %v48
    %v54 = vstv %s52
    %v55 = vrcp.pop %v53
    %v56 = vmul.f32 %v54, %v55
    %v57 = vadd.f32 %v56, 1.0
    %v58 = vmul.f32 %v33, %v51
    %v59 = vadd.f32 %v31, %v58
    %60 = vst [vmem:[#allocation5] sm:$0x1] %v59
    %v61 = vand.u32 2147483647, %v51
    %v62 = vlog2.pop %v61
    %v63 = vmul.f32 %v62, 0.6931472
    %v64 = vmul.f32 %v63, 31.0
    %v65 = vand.u32 2147483647, %v57
    %v66 = vlog2.pop %v65
    %v67 = vmul.f32 %v66, 0.6931472
    %v68 = vadd.f32 %v64, %v67
    %v69 = vand.u32 2147483647, %v33
    %v70 = vlog2.pop %v69
    %v71 = vmul.f32 %v70, 0.6931472
    %v72 = vmul.f32 %v71, 31.0
    %v73 = vadd.f32 %v72, %v68
    %74 = vst [vmem:[#allocation6] sm:$0x1] %v73
    // Predicated region
    $region18: #{tpu_custom_call.1} parent=1 // pred_check
      _
    $region19: #{tpu_custom_call.1} parent=1 // pred_check_branch
      %76 = sbr.rel (0) target = $region21
    $region20: #{tpu_custom_call.1} parent=1 // pred_region
      %s78 = ssub.s32 16, 16
      %79 = vsyncadd [#allocation3], %s78
      %s81 = sshll.u32 [#allocation5], 4
      %s82 = int_to_ptr.vmem [resolvable:$true] %s81
      %84 = dma.vmem_to_hbm [thread:$0]  %s82, 16, %s3, [#allocation3]
    $region21: #{tpu_custom_call.1} parent=1 // pred_fallthru
      _
    // Predicated region
    $region22: #{tpu_custom_call.1} parent=1 // pred_check
      _
    $region23: #{tpu_custom_call.1} parent=1 // pred_check_branch
      %86 = sbr.rel (0) target = $region25
    $region24: #{tpu_custom_call.1} parent=1 // pred_region
      %s88 = ssub.s32 16, 16
      %89 = vsyncadd [#allocation7], %s88
      %s91 = sshll.u32 [#allocation6], 4
      %s92 = int_to_ptr.vmem [resolvable:$true] %s91
      %94 = dma.vmem_to_hbm [thread:$0]  %s92, 16, %s4, [#allocation7]
    $region25: #{tpu_custom_call.1} parent=1 // pred_fallthru
      _
    // Predicated region
    $region26: #{tpu_custom_call.1} parent=1 // pred_check
      _
    $region27: #{tpu_custom_call.1} parent=1 // pred_check_branch
      %96 = sbr.rel (0) target = $region29
    $region28: #{tpu_custom_call.1} parent=1 // pred_region
      %97 = dma.done [#allocation3], 16
    $region29: #{tpu_custom_call.1} parent=1 // pred_fallthru
      _
    // Predicated region
    $region30: #{tpu_custom_call.1} parent=1 // pred_check
      _
    $region31: #{tpu_custom_call.1} parent=1 // pred_check_branch
      %99 = sbr.rel (0) target = $region33
    $region32: #{tpu_custom_call.1} parent=1 // pred_region
      %100 = dma.done [#allocation7], 16
    $region33: #{tpu_custom_call.1} parent=1 // pred_fallthru
      _
    %101 = vsyncpa [#allocation3], 1
    %102 = vsyncpa [#allocation7], 1
    %103 = vsyncpa [#allocation4], 1

</llo_original>
